<compile_context>
chip_gen: v7x
topology: tpu7x:2x2x1
jax: 0.10.0
libtpu: 0.0.40
codegen_flags: <defaults>
</compile_context>

<pallas_src>
import functools

import jax
import jax.numpy as jnp
from jax.experimental import pallas as pl
from jax.experimental.pallas import tpu as pltpu

INPUT_SIZE = 2
HIDDEN_SIZE = 4
OUTPUT_SIZE = 1
_LANE = 128

# Flat SMEM parameter layout (17 scalars):
#   [0:8)   w1 (HIDDEN, IN) row-major
#   [8:12)  b1
#   [12:16) w2 (OUT, HIDDEN) row-major
#   [16]    b2
_W1_OFF = 0
_B1_OFF = INPUT_SIZE * HIDDEN_SIZE
_W2_OFF = _B1_OFF + HIDDEN_SIZE
_B2_OFF = _W2_OFF + HIDDEN_SIZE
_N_PARAMS = _B2_OFF + OUTPUT_SIZE


def _make_kernel(compute_dtype):
    """Builds the dense-tile MLP kernel for a given compute dtype."""

    def ann_kernel(params_ref, x_ref, o_ref):
        # params_ref: SMEM (17,) f32 (scalar-prefetched).
        # x_ref:      VMEM (INPUT_SIZE, R, 128) -- sublane+lane dense batch slab.
        # o_ref:      VMEM (R, 128) f32.
        cdt = compute_dtype
        x0 = x_ref[0].astype(cdt)          # (R, 128)
        x1 = x_ref[1].astype(cdt)          # (R, 128)

        # Read all 17 scalars once per tile (scalar path; splats stay in regs).
        w1 = [params_ref[_W1_OFF + k].astype(cdt)
              for k in range(INPUT_SIZE * HIDDEN_SIZE)]
        b1 = [params_ref[_B1_OFF + j].astype(cdt) for j in range(HIDDEN_SIZE)]
        w2 = [params_ref[_W2_OFF + j].astype(cdt) for j in range(HIDDEN_SIZE)]
        b2 = params_ref[_B2_OFF]           # keep f32; added once at the end

        acc = None
        for j in range(HIDDEN_SIZE):       # unrolled at trace time (4 units)
            # fc1 row j + ReLU, all on the VPU across the dense batch slab.
            h_j = jnp.maximum(w1[INPUT_SIZE * j] * x0
                              + w1[INPUT_SIZE * j + 1] * x1
                              + b1[j], 0.0)            # (R, 128)
            term = w2[j] * h_j                         # fc2 contribution
            acc = term if acc is None else acc + term
        o_ref[...] = acc.astype(jnp.float32) + b2

    return ann_kernel


def _choose_tile_rows(n_rows, max_tile_rows):
    """Pick R (sublane rows per tile). Multiple of 8, or the full extent for
    tiny arrays; prefers >=2 grid tiles so both v7x TensorCores get work."""
    max_rows = max(8, (int(max_tile_rows) // 8) * 8)
    if n_rows <= max_rows:
        if n_rows >= 16:
            half = (((n_rows + 1) // 2) + 7) // 8 * 8
            return min(half, max_rows)
        return n_rows          # single tile; R == full dim is always legal
    return max_rows


def ann_forward_feature_major(x_fm, w1, b1, w2, b2, *,
                              max_tile_rows=2048,
                              compute_dtype=jnp.float32):
    """Kernel-native entry point.

    x_fm: (INPUT_SIZE, B) f32, feature-major (no layout round trip needed).
    Returns (B,) f32 equal to fc2(relu(fc1(x))) squeezed on the output dim.
    """
    B = x_fm.shape[1]
    n_rows = (B + _LANE - 1) // _LANE
    b_pad = n_rows * _LANE
    if b_pad != B:                                   # pad only to a 128 multiple
        x_fm = jnp.pad(x_fm, ((0, 0), (0, b_pad - B)))
    # Free row-major reshape into the sublane+lane dense form.
    x_dense = x_fm.reshape(INPUT_SIZE, n_rows, _LANE)

    tile_rows = _choose_tile_rows(n_rows, max_tile_rows)
    num_tiles = pl.cdiv(n_rows, tile_rows)           # ragged last tile is OK

    # All 17 parameters as one flat f32 vector; scalar-prefetched into SMEM.
    params = jnp.concatenate([
        jnp.asarray(w1, jnp.float32).reshape(-1),
        jnp.asarray(b1, jnp.float32).reshape(-1),
        jnp.asarray(w2, jnp.float32).reshape(-1),
        jnp.asarray(b2, jnp.float32).reshape(-1),
    ])

    out_dense = pl.pallas_call(
        _make_kernel(compute_dtype),
        out_shape=jax.ShapeDtypeStruct((n_rows, _LANE), jnp.float32),
        grid_spec=pltpu.PrefetchScalarGridSpec(
            num_scalar_prefetch=1,
            grid=(num_tiles,),
            in_specs=[
                pl.BlockSpec((INPUT_SIZE, tile_rows, _LANE),
                             lambda i, _params: (0, i, 0)),
            ],
            out_specs=pl.BlockSpec((tile_rows, _LANE),
                                   lambda i, _params: (i, 0)),
        ),
        compiler_params=pltpu.CompilerParams(
            # Batch tiles are independent -> shard across both TCs on v7x.
            dimension_semantics=("parallel",),
            # Covers v5e's 16 MiB default scoped VMEM at the default tile size;
            # well under v7x's 64 MiB physical.
            vmem_limit_bytes=32 * 1024 * 1024,
        ),
    )(params, x_dense)

    # De-layout is a free reshape (+ a small slice when B is not a 128 multiple).
    return out_dense.reshape(b_pad)[:B]


@functools.partial(jax.jit, static_argnames=("max_tile_rows", "compute_dtype"))
def ann_forward(x, w1, b1, w2, b2, *, max_tile_rows=2048,
                compute_dtype=jnp.float32):
    """PyTorch-layout wrapper: x (B, 2) -> (B, 1), matching fc2(relu(fc1(x))).

    Does one fused transpose(+pad) to reach the kernel-native feature-major
    layout; call ann_forward_feature_major directly to avoid even that.
    """
    B = x.shape[0]
    x_fm = jnp.asarray(x, jnp.float32).T                        # (IN, B)
    y = ann_forward_feature_major(x_fm, w1, b1, w2, b2,
                                  max_tile_rows=max_tile_rows,
                                  compute_dtype=compute_dtype)
    return y.reshape(B, OUTPUT_SIZE)                            # free reshape


def init_params(key):
    """Deterministic init mimicking PyTorch nn.Linear default (U(+-1/sqrt(fan_in)))."""
    k1, k2, k3, k4 = jax.random.split(key, 4)
    bound1 = 1.0 / jnp.sqrt(INPUT_SIZE)
    bound2 = 1.0 / jnp.sqrt(HIDDEN_SIZE)
    w1 = jax.random.uniform(k1, (HIDDEN_SIZE, INPUT_SIZE), jnp.float32, -bound1, bound1)
    b1 = jax.random.uniform(k2, (HIDDEN_SIZE,), jnp.float32, -bound1, bound1)
    w2 = jax.random.uniform(k3, (OUTPUT_SIZE, HIDDEN_SIZE), jnp.float32, -bound2, bound2)
    b2 = jax.random.uniform(k4, (OUTPUT_SIZE,), jnp.float32, -bound2, bound2)
    return w1, b1, w2, b2


def _reference(x, w1, b1, w2, b2):
    return jnp.maximum(x @ w1.T + b1, 0.0) @ w2.T + b2


if __name__ == "__main__":
    key = jax.random.PRNGKey(0)
    k_params, k_x1, k_x2, k_x3 = jax.random.split(key, 4)
    w1, b1, w2, b2 = init_params(k_params)

    # Tiny demo batch consistent with the module (2 input features).
    batch = 8
    x = jax.random.normal(k_x1, (batch, INPUT_SIZE), jnp.float32)
    out = jax.block_until_ready(ann_forward(x, w1, b1, w2, b2))
    assert out.shape == (batch, OUTPUT_SIZE)
    assert jnp.allclose(out, _reference(x, w1, b1, w2, b2), atol=1e-5, rtol=1e-5)

    # Non-multiple-of-128 batch: exercises the 128-lane pad + small full-extent tile.
    batch2 = 300
    x2 = jax.random.normal(k_x2, (batch2, INPUT_SIZE), jnp.float32)
    out2 = jax.block_until_ready(ann_forward(x2, w1, b1, w2, b2))
    assert out2.shape == (batch2, OUTPUT_SIZE)
    assert jnp.allclose(out2, _reference(x2, w1, b1, w2, b2), atol=1e-5, rtol=1e-5)

    # Larger batch spanning several grid tiles with a ragged last block:
    # exercises dense (R,128) slabs, the cdiv grid, and the parallel axis.
    batch3 = 41 * _LANE + 17
    x3 = jax.random.normal(k_x3, (batch3, INPUT_SIZE), jnp.float32)
    out3 = jax.block_until_ready(ann_forward(x3, w1, b1, w2, b2, max_tile_rows=16))
    assert out3.shape == (batch3, OUTPUT_SIZE)
    ref3 = _reference(x3, w1, b1, w2, b2)
    assert jnp.allclose(out3, ref3, atol=1e-5, rtol=1e-5)

    # Optional bf16 compute path (v6e/v7x VALU lever); loose tolerance for bf16.
    out3_bf16 = jax.block_until_ready(
        ann_forward(x3, w1, b1, w2, b2, max_tile_rows=16,
                    compute_dtype=jnp.bfloat16))
    assert out3_bf16.shape == (batch3, OUTPUT_SIZE)
    assert jnp.allclose(out3_bf16, ref3, atol=1e-1, rtol=1e-1)

    print("KERNEL_OK")
</pallas_src>

<mosaic_0001>
module attributes {stable_mosaic.version = 11 : i64} {
  func.func @ann_kernel(%arg0: i32, %arg1: memref<17xf32, #tpu.memory_space<smem>>, %arg2: memref<2x1x128xf32, #tpu.memory_space<vmem>>, %arg3: memref<1x128xf32, #tpu.memory_space<vmem>>) attributes {dimension_semantics = [#tpu.dimension_semantics<parallel>], iteration_bounds = array<i64: 1>, scalar_prefetch = 1 : i64, scratch_operands = 0 : i64, tpu.core_type = #tpu.core_type<tc>, window_params = [{transform_indices = @transform_0, window_bounds = array<i64: 2, 1, 128>}, {transform_indices = @transform_1, window_bounds = array<i64: 1, 128>}]} {
    %c0 = arith.constant 0 : index
    %c0_0 = arith.constant 0 : index
    %c0_1 = arith.constant 0 : index
    %0 = vector.load %arg2[%c0, %c0_0, %c0_1] : memref<2x1x128xf32, #tpu.memory_space<vmem>>, vector<1x1x128xf32>
    %1 = vector.shape_cast %0 : vector<1x1x128xf32> to vector<1x128xf32>
    %c1 = arith.constant 1 : index
    %c0_2 = arith.constant 0 : index
    %c0_3 = arith.constant 0 : index
    %2 = vector.load %arg2[%c1, %c0_2, %c0_3] : memref<2x1x128xf32, #tpu.memory_space<vmem>>, vector<1x1x128xf32>
    %3 = vector.shape_cast %2 : vector<1x1x128xf32> to vector<1x128xf32>
    %c0_4 = arith.constant 0 : index
    %4 = memref.load %arg1[%c0_4] : memref<17xf32, #tpu.memory_space<smem>>
    %c1_5 = arith.constant 1 : index
    %5 = memref.load %arg1[%c1_5] : memref<17xf32, #tpu.memory_space<smem>>
    %c2 = arith.constant 2 : index
    %6 = memref.load %arg1[%c2] : memref<17xf32, #tpu.memory_space<smem>>
    %c3 = arith.constant 3 : index
    %7 = memref.load %arg1[%c3] : memref<17xf32, #tpu.memory_space<smem>>
    %c4 = arith.constant 4 : index
    %8 = memref.load %arg1[%c4] : memref<17xf32, #tpu.memory_space<smem>>
    %c5 = arith.constant 5 : index
    %9 = memref.load %arg1[%c5] : memref<17xf32, #tpu.memory_space<smem>>
    %c6 = arith.constant 6 : index
    %10 = memref.load %arg1[%c6] : memref<17xf32, #tpu.memory_space<smem>>
    %c7 = arith.constant 7 : index
    %11 = memref.load %arg1[%c7] : memref<17xf32, #tpu.memory_space<smem>>
    %c8 = arith.constant 8 : index
    %12 = memref.load %arg1[%c8] : memref<17xf32, #tpu.memory_space<smem>>
    %c9 = arith.constant 9 : index
    %13 = memref.load %arg1[%c9] : memref<17xf32, #tpu.memory_space<smem>>
    %c10 = arith.constant 10 : index
    %14 = memref.load %arg1[%c10] : memref<17xf32, #tpu.memory_space<smem>>
    %c11 = arith.constant 11 : index
    %15 = memref.load %arg1[%c11] : memref<17xf32, #tpu.memory_space<smem>>
    %c12 = arith.constant 12 : index
    %16 = memref.load %arg1[%c12] : memref<17xf32, #tpu.memory_space<smem>>
    %c13 = arith.constant 13 : index
    %17 = memref.load %arg1[%c13] : memref<17xf32, #tpu.memory_space<smem>>
    %c14 = arith.constant 14 : index
    %18 = memref.load %arg1[%c14] : memref<17xf32, #tpu.memory_space<smem>>
    %c15 = arith.constant 15 : index
    %19 = memref.load %arg1[%c15] : memref<17xf32, #tpu.memory_space<smem>>
    %c16 = arith.constant 16 : index
    %20 = memref.load %arg1[%c16] : memref<17xf32, #tpu.memory_space<smem>>
    %21 = vector.broadcast %4 : f32 to vector<1x128xf32>
    %22 = arith.mulf %21, %1 : vector<1x128xf32>
    %23 = vector.broadcast %5 : f32 to vector<1x128xf32>
    %24 = arith.mulf %23, %3 : vector<1x128xf32>
    %25 = arith.addf %22, %24 : vector<1x128xf32>
    %26 = vector.broadcast %12 : f32 to vector<1x128xf32>
    %27 = arith.addf %25, %26 : vector<1x128xf32>
    %cst = arith.constant 0.000000e+00 : f32
    %28 = vector.broadcast %cst : f32 to vector<1x128xf32>
    %29 = arith.maximumf %27, %28 : vector<1x128xf32>
    %30 = vector.broadcast %16 : f32 to vector<1x128xf32>
    %31 = arith.mulf %30, %29 : vector<1x128xf32>
    %32 = vector.broadcast %6 : f32 to vector<1x128xf32>
    %33 = arith.mulf %32, %1 : vector<1x128xf32>
    %34 = vector.broadcast %7 : f32 to vector<1x128xf32>
    %35 = arith.mulf %34, %3 : vector<1x128xf32>
    %36 = arith.addf %33, %35 : vector<1x128xf32>
    %37 = vector.broadcast %13 : f32 to vector<1x128xf32>
    %38 = arith.addf %36, %37 : vector<1x128xf32>
    %cst_6 = arith.constant 0.000000e+00 : f32
    %39 = vector.broadcast %cst_6 : f32 to vector<1x128xf32>
    %40 = arith.maximumf %38, %39 : vector<1x128xf32>
    %41 = vector.broadcast %17 : f32 to vector<1x128xf32>
    %42 = arith.mulf %41, %40 : vector<1x128xf32>
    %43 = arith.addf %31, %42 : vector<1x128xf32>
    %44 = vector.broadcast %8 : f32 to vector<1x128xf32>
    %45 = arith.mulf %44, %1 : vector<1x128xf32>
    %46 = vector.broadcast %9 : f32 to vector<1x128xf32>
    %47 = arith.mulf %46, %3 : vector<1x128xf32>
    %48 = arith.addf %45, %47 : vector<1x128xf32>
    %49 = vector.broadcast %14 : f32 to vector<1x128xf32>
    %50 = arith.addf %48, %49 : vector<1x128xf32>
    %cst_7 = arith.constant 0.000000e+00 : f32
    %51 = vector.broadcast %cst_7 : f32 to vector<1x128xf32>
    %52 = arith.maximumf %50, %51 : vector<1x128xf32>
    %53 = vector.broadcast %18 : f32 to vector<1x128xf32>
    %54 = arith.mulf %53, %52 : vector<1x128xf32>
    %55 = arith.addf %43, %54 : vector<1x128xf32>
    %56 = vector.broadcast %10 : f32 to vector<1x128xf32>
    %57 = arith.mulf %56, %1 : vector<1x128xf32>
    %58 = vector.broadcast %11 : f32 to vector<1x128xf32>
    %59 = arith.mulf %58, %3 : vector<1x128xf32>
    %60 = arith.addf %57, %59 : vector<1x128xf32>
    %61 = vector.broadcast %15 : f32 to vector<1x128xf32>
    %62 = arith.addf %60, %61 : vector<1x128xf32>
    %cst_8 = arith.constant 0.000000e+00 : f32
    %63 = vector.broadcast %cst_8 : f32 to vector<1x128xf32>
    %64 = arith.maximumf %62, %63 : vector<1x128xf32>
    %65 = vector.broadcast %19 : f32 to vector<1x128xf32>
    %66 = arith.mulf %65, %64 : vector<1x128xf32>
    %67 = arith.addf %55, %66 : vector<1x128xf32>
    %68 = vector.broadcast %20 : f32 to vector<1x128xf32>
    %69 = arith.addf %67, %68 : vector<1x128xf32>
    %c0_9 = arith.constant 0 : index
    %c0_10 = arith.constant 0 : index
    %70 = vector.load %arg3[%c0_9, %c0_10] : memref<1x128xf32, #tpu.memory_space<vmem>>, vector<1x128xf32>
    tpu.vector_store %arg3[%c0_9, %c0_10], %69 {strides = array<i32>} : memref<1x128xf32, #tpu.memory_space<vmem>>, vector<1x128xf32>,
    return
  }
  func.func @transform_0(%arg0: i32, %arg1: memref<17xf32, #tpu.memory_space<smem>>) -> (i32, i32, i32) {
    %c0_i32 = arith.constant 0 : i32
    %c0_i32_0 = arith.constant 0 : i32
    %c0_i32_1 = arith.constant 0 : i32
    return %c0_i32, %arg0, %c0_i32_0 : i32, i32, i32
  }
  func.func @transform_1(%arg0: i32, %arg1: memref<17xf32, #tpu.memory_space<smem>>) -> (i32, i32) {
    %c0_i32 = arith.constant 0 : i32
    %c0_i32_0 = arith.constant 0 : i32
    return %arg0, %c0_i32 : i32, i32
  }
}

</mosaic_0001>

<llo_original>
// kernel: ann_forward.1
$region0: #{ann_forward.1}
  #allocation0 [shape = 'u32[]', space=smem, size = 0x4, offset = 0x4, fixed_abs, tag = 'smem constant byte address 0x4 - core index']
  #allocation1 [shape = 'u32[144,128]{1,0:T(1,128)}', space=vmem, size = 0x12000, scoped, tag = 'internal scratch']
  #allocation2 [shape = 's32[1]{0}', space=sflag, size = 0x4, scoped, tag = 'scoped memory for ann_forward.1']
  #allocation3 [shape = 'u8[512]{0}', space=smem, size = 0x200, scoped, tag = 'prefetched SMEM operand 0']
  %s0 = inlined_call_operand.vmem [shape: f32[17], index: 0, kind: input, shape index: {}]
  %s1 = inlined_call_operand.vmem [shape: f32[2,1,128], index: 1, kind: input, shape index: {}]
  %s2 = inlined_call_operand.vmem [shape: f32[1,128], index: 2, kind: output, shape index: {}]
  %s3 = sld [smem:[#allocation0]]
  $region14: #{ann_forward.1} parent=0
    _
  %s5 = ssub.s32 1, %s3
  %s6 = scalar_select 0, %s5, %s3
  %s7 = sshll.u32 %s0, 4
  %s8 = int_to_ptr.vmem [resolvable:$true] %s7
  %10 = dma.vmem_to_smem %s8, 16, [#allocation3], [#allocation2]
  %11 = dma.done [#allocation2], 16
  %12 = sfence
  // Predicated region
  $region2: #{ann_forward.1} parent=0 // pred_check
    _
  $region3: #{ann_forward.1} parent=0 // pred_check_branch
    %14 = sbr.rel (0) target = $region5
  $region4: #{ann_forward.1} parent=0 // pred_region
    _
  $region5: #{ann_forward.1} parent=0 // pred_fallthru
    _
  %v15 = vld [vmem:[%s1] sm:$0x1]
  %s16 = scalar_lea.vmem %s1, 1
  %v17 = vld [vmem:[%s16] sm:$0x1]
  %s18 = sld [smem:[#allocation3]]
  %s19 = sld [smem:[#allocation3 + $0x1]]
  %s20 = sld [smem:[#allocation3 + $0x2]]
  %s21 = sld [smem:[#allocation3 + $0x3]]
  %s22 = sld [smem:[#allocation3 + $0x4]]
  %s23 = sld [smem:[#allocation3 + $0x5]]
  %s24 = sld [smem:[#allocation3 + $0x6]]
  %s25 = sld [smem:[#allocation3 + $0x7]]
  %s26 = sld [smem:[#allocation3 + $0x8]]
  %s27 = sld [smem:[#allocation3 + $0x9]]
  %s28 = sld [smem:[#allocation3 + $0xa]]
  %s29 = sld [smem:[#allocation3 + $0xb]]
  %s30 = sld [smem:[#allocation3 + $0xc]]
  %s31 = sld [smem:[#allocation3 + $0xd]]
  %s32 = sld [smem:[#allocation3 + $0xe]]
  %s33 = sld [smem:[#allocation3 + $0xf]]
  %s34 = sld [smem:[#allocation3 + $0x10]]
  %v35 = vstv %s18
  %v36 = vmul.f32 %v35, %v15
  %v37 = vstv %s19
  %v38 = vmul.f32 %v37, %v17
  %v39 = vadd.f32 %v36, %v38
  %v40 = vstv %s26
  %v41 = vadd.f32 %v39, %v40
  %v42 = vmax.f32 %v41, 0.0
  %v43 = vstv %s30
  %v44 = vmul.f32 %v43, %v42
  %v45 = vstv %s20
  %v46 = vmul.f32 %v45, %v15
  %v47 = vstv %s21
  %v48 = vmul.f32 %v47, %v17
  %v49 = vadd.f32 %v46, %v48
  %v50 = vstv %s27
  %v51 = vadd.f32 %v49, %v50
  %v52 = vmax.f32 %v51, 0.0
  %v53 = vstv %s31
  %v54 = vmul.f32 %v53, %v52
  %v55 = vadd.f32 %v44, %v54
  %v56 = vstv %s22
  %v57 = vmul.f32 %v56, %v15
  %v58 = vstv %s23
  %v59 = vmul.f32 %v58, %v17
  %v60 = vadd.f32 %v57, %v59
  %v61 = vstv %s28
  %v62 = vadd.f32 %v60, %v61
  %v63 = vmax.f32 %v62, 0.0
  %v64 = vstv %s32
  %v65 = vmul.f32 %v64, %v63
  %v66 = vadd.f32 %v55, %v65
  %v67 = vstv %s24
  %v68 = vmul.f32 %v67, %v15
  %v69 = vstv %s25
  %v70 = vmul.f32 %v69, %v17
  %v71 = vadd.f32 %v68, %v70
  %v72 = vstv %s29
  %v73 = vadd.f32 %v71, %v72
  %v74 = vmax.f32 %v73, 0.0
  %v75 = vstv %s33
  %v76 = vmul.f32 %v75, %v74
  %v77 = vadd.f32 %v66, %v76
  %v78 = vstv %s34
  %v79 = vadd.f32 %v77, %v78
  %80 = vst [vmem:[%s2] sm:$0x1] %v79
  // Predicated region
  $region6: #{ann_forward.1} parent=0 // pred_check
    _
  $region7: #{ann_forward.1} parent=0 // pred_check_branch
    %82 = sbr.rel (0) target = $region9
  $region8: #{ann_forward.1} parent=0 // pred_region
    _
  $region9: #{ann_forward.1} parent=0 // pred_fallthru
    _
  // Predicated region
  $region10: #{ann_forward.1} parent=0 // pred_check
    _
  $region11: #{ann_forward.1} parent=0 // pred_check_branch
    %84 = sbr.rel (0) target = $region13
  $region12: #{ann_forward.1} parent=0 // pred_region
    _
  $region13: #{ann_forward.1} parent=0 // pred_fallthru
    _

</llo_original>
